<compile_context>
chip_gen: v5e
topology: v5e:2x2
jax: 0.10.0
libtpu: 0.0.40
codegen_flags: <defaults>
</compile_context>

<pallas_src>
import math

import jax
import jax.numpy as jnp
from jax.experimental import pallas as pl
from jax.experimental.pallas import tpu as pltpu


def _round_up(a: int, b: int) -> int:
    return (a + b - 1) // b * b


# ----------------------------------------------------------------------------
# Kernel
# ----------------------------------------------------------------------------
def _temp_residual_kernel(x_ref, w1_ref, w2_ref, dyt_ref, o_ref):
    # x_ref  : (tm, Wp)   activation row tile (f32 or bf16)
    # w1_ref : (Wp, Wp)   bf16 fc1 weight, laid out (in, out)
    # w2_ref : (Wp, Wp)   bf16 fc2 weight, laid out (in, out)
    # dyt_ref: (6, Wp)    f32 rows: [a1, g1, b1, a2, g2, b2]
    # o_ref  : (tm, Wp)   output tile
    x = x_ref[...]
    x_bf = x.astype(jnp.bfloat16)
    x_f32 = x.astype(jnp.float32)

    dyt = dyt_ref[...]
    a1, g1, b1 = dyt[0:1, :], dyt[1:2, :], dyt[2:3, :]
    a2, g2, b2 = dyt[3:4, :], dyt[4:5, :], dyt[5:6, :]

    # fc1 -> DyT -> ReLU   (bf16 MXU inputs, f32 accumulation)
    h = jnp.dot(x_bf, w1_ref[...], preferred_element_type=jnp.float32)
    h = jnp.tanh(h * a1) * g1 + b1
    h = jnp.maximum(h, 0.0)

    # fc2 -> DyT
    h = jnp.dot(h.astype(jnp.bfloat16), w2_ref[...],
                preferred_element_type=jnp.float32)
    h = jnp.tanh(h * a2) * g2 + b2

    # residual add -> ReLU  (lane-dense store)
    h = h + x_f32
    o_ref[...] = jnp.maximum(h, 0.0).astype(o_ref.dtype)


# ----------------------------------------------------------------------------
# Wrapper
# ----------------------------------------------------------------------------
def temp_residual_layer_forward(data, w1, w2,
                                alpha1, gamma1, beta1,
                                alpha2, gamma2, beta2,
                                *, block_rows=512):
    """Forward pass of tempResidualLayer (eval mode).

    data  : (..., width)
    w1,w2 : (width, width) fc weights laid out (in, out)  (PyTorch W transposed)
    alpha*: scalar DyT alpha;  gamma*, beta*: (width,) DyT scale / shift
    """
    orig_shape = data.shape
    orig_dtype = data.dtype
    width = orig_shape[-1]
    x = data.reshape(-1, width)
    n = x.shape[0]

    def _vec(v):
        v = jnp.asarray(v, jnp.float32).reshape(-1)
        if v.shape[0] == 1:
            v = jnp.broadcast_to(v, (width,))
        return v

    a1, g1, b1 = _vec(alpha1), _vec(gamma1), _vec(beta1)
    a2, g2, b2 = _vec(alpha2), _vec(gamma2), _vec(beta2)
    w1 = jnp.asarray(w1, jnp.float32)
    w2 = jnp.asarray(w2, jnp.float32)

    slice_cols = False
    if width % 128 == 0:
        # Already lane-dense: stream activations untouched (no pad, no slice).
        pack, wp = 1, width
        x_in = x
        w1p = w1.astype(jnp.bfloat16)
        w2p = w2.astype(jnp.bfloat16)
        dyt_rows = [a1, g1, b1, a2, g2, b2]
    elif 128 % width == 0:
        # Lane-pack `pack` consecutive rows into one 128-lane row (a free
        # contiguous reshape) and use block-diagonal weights + lane-tiled
        # DyT params.  Avoids feature padding entirely.
        pack, wp = 128 // width, 128
        if n % pack != 0:
            pad_rows = pack - n % pack          # rare tail: tiny row pad
            x = jnp.concatenate(
                [x, jnp.zeros((pad_rows, width), x.dtype)], axis=0)
        x_in = x.reshape(-1, wp)
        eye = jnp.eye(pack, dtype=jnp.float32)
        w1p = jnp.kron(eye, w1).astype(jnp.bfloat16)
        w2p = jnp.kron(eye, w2).astype(jnp.bfloat16)
        dyt_rows = [jnp.tile(v, pack) for v in (a1, g1, b1, a2, g2, b2)]
    else:
        # Irregular width: a zero-pad copy is unavoidable; fuse a bf16
        # downcast into it so the kernel streams half the input bytes.
        pack = 1
        wp = _round_up(width, 128)
        x_in = jnp.zeros((n, wp), jnp.bfloat16).at[:, :width].set(
            x.astype(jnp.bfloat16))

        def _padw(w):
            return jnp.zeros((wp, wp), jnp.float32).at[:width, :width].set(
                w).astype(jnp.bfloat16)

        def _padv(v, fill):
            return jnp.full((wp,), fill, jnp.float32).at[:width].set(v)

        w1p, w2p = _padw(w1), _padw(w2)
        dyt_rows = [_padv(a1, 1.0), _padv(g1, 0.0), _padv(b1, 0.0),
                    _padv(a2, 1.0), _padv(g2, 0.0), _padv(b2, 0.0)]
        slice_cols = True

    dyt = jnp.stack(dyt_rows)                   # (6, Wp) f32
    rows = x_in.shape[0]

    # Row tile: multiple of 8, <= block_rows, and >=4 grid steps when N allows
    # (v7x's two TensorCores each get >=2 pipelined steps).
    tm = max(8, _round_up(pl.cdiv(rows, 4), 8))
    tm = min(tm, block_rows, _round_up(rows, 8))
    grid = (pl.cdiv(rows, tm),)

    # Resident weights: single-buffer once the double-buffered copy would be
    # large (matters for wide layers on v7x's 64 MiB VMEM).  Constant index_map
    # -> Buffered(1) costs nothing.
    weight_bytes = 2 * wp * wp * 2              # both bf16 weights, one buffer
    if 2 * weight_bytes > (16 << 20):
        w_spec = pl.BlockSpec((wp, wp), lambda i: (0, 0),
                              pipeline_mode=pl.Buffered(1))
        weight_bufs = 1
    else:
        w_spec = pl.BlockSpec((wp, wp), lambda i: (0, 0))
        weight_bufs = 2

    out_dtype = orig_dtype
    x_item = jnp.dtype(x_in.dtype).itemsize
    o_item = jnp.dtype(out_dtype).itemsize
    vmem_needed = (weight_bufs * weight_bytes
                   + 2 * tm * wp * (x_item + o_item)   # double-buffered x/out
                   + 2 * 6 * wp * 4)                   # DyT params
    vmem_limit = min(100 * 1024 * 1024,
                     max(32 * 1024 * 1024, int(vmem_needed * 3 // 2)))

    out = pl.pallas_call(
        _temp_residual_kernel,
        out_shape=jax.ShapeDtypeStruct((rows, wp), out_dtype),
        grid_spec=pltpu.PrefetchScalarGridSpec(
            num_scalar_prefetch=0,
            grid=grid,
            in_specs=[
                pl.BlockSpec((tm, wp), lambda i: (i, 0)),   # activation rows
                w_spec,                                     # fc1 (resident)
                w_spec,                                     # fc2 (resident)
                pl.BlockSpec((6, wp), lambda i: (0, 0)),    # DyT params
            ],
            out_specs=pl.BlockSpec((tm, wp), lambda i: (i, 0)),
        ),
        compiler_params=pltpu.CompilerParams(
            dimension_semantics=("parallel",),   # megacore-shard row tiles
            vmem_limit_bytes=vmem_limit,
        ),
    )(x_in, w1p, w2p, dyt)

    if pack > 1:
        out = out.reshape(-1, width)            # undo lane-packing (free)
        if out.shape[0] != n:
            out = out[:n]
    elif slice_cols:
        out = out[:, :width]
    return out.reshape(orig_shape).astype(orig_dtype)


# ----------------------------------------------------------------------------
# Deterministic parameter init (mirrors weight_initializer: trunc_normal,
# std = sqrt(1 / fan_avg / 10), truncated at +/- 2*std)
# ----------------------------------------------------------------------------
def init_linear_weight(key, in_features, out_features):
    fan_avg = 0.5 * (in_features + out_features)
    std = math.sqrt(1.0 / fan_avg / 10.0)
    # PyTorch weight shape is (out, in); sample then transpose to (in, out).
    w = jax.random.truncated_normal(
        key, -2.0, 2.0, (out_features, in_features), jnp.float32) * std
    return jnp.transpose(w)


# ----------------------------------------------------------------------------
# Pure-JAX reference (matches the PyTorch forward)
# ----------------------------------------------------------------------------
def temp_residual_layer_reference(data, w1, w2,
                                  alpha1, gamma1, beta1,
                                  alpha2, gamma2, beta2,
                                  *, matmul_dtype=jnp.float32):
    shape = data.shape
    x = data.reshape(-1, shape[-1]).astype(jnp.float32)

    def mm(a, w):
        return jnp.dot(a.astype(matmul_dtype), w.astype(matmul_dtype),
                       preferred_element_type=jnp.float32)

    out = mm(x, w1)
    out = jnp.tanh(alpha1 * out) * gamma1 + beta1
    out = jnp.maximum(out, 0.0)
    out = mm(out, w2)
    out = jnp.tanh(alpha2 * out) * gamma2 + beta2
    out = out + x
    out = jnp.maximum(out, 0.0)
    return out.reshape(shape)


if __name__ == "__main__":
    key = jax.random.PRNGKey(0)
    k_data, k_w1, k_w2, k_g1, k_b1, k_g2, k_b2 = jax.random.split(key, 7)

    # --- test 1: width=32 -> lane-packed path (pack=4, no pad/slice) --------
    batch, num_pixels, width = 2, 256, 32
    data = jax.random.normal(k_data, (batch, num_pixels, width), jnp.float32)

    w1 = init_linear_weight(k_w1, width, width)
    w2 = init_linear_weight(k_w2, width, width)

    alpha1 = jnp.float32(0.5)
    alpha2 = jnp.float32(0.5)
    gamma1 = 1.0 + 0.1 * jax.random.normal(k_g1, (width,), jnp.float32)
    beta1 = 0.1 * jax.random.normal(k_b1, (width,), jnp.float32)
    gamma2 = 1.0 + 0.1 * jax.random.normal(k_g2, (width,), jnp.float32)
    beta2 = 0.1 * jax.random.normal(k_b2, (width,), jnp.float32)

    out = temp_residual_layer_forward(
        data, w1, w2, alpha1, gamma1, beta1, alpha2, gamma2, beta2)
    out = jax.block_until_ready(out)

    ref_bf16 = temp_residual_layer_reference(
        data, w1, w2, alpha1, gamma1, beta1, alpha2, gamma2, beta2,
        matmul_dtype=jnp.bfloat16)
    ref_f32 = temp_residual_layer_reference(
        data, w1, w2, alpha1, gamma1, beta1, alpha2, gamma2, beta2,
        matmul_dtype=jnp.float32)

    assert out.shape == data.shape, out.shape
    assert jnp.allclose(out, ref_bf16, atol=2e-3, rtol=2e-3), \
        "mismatch vs bf16-matmul reference (width=32)"
    assert jnp.allclose(out, ref_f32, atol=5e-2, rtol=5e-2), \
        "mismatch vs f32 reference (width=32)"

    # --- test 2: width=128 -> direct streaming, partial trailing row block --
    kk = jax.random.split(jax.random.fold_in(key, 1), 5)
    width2 = 128
    data2 = jax.random.normal(kk[0], (3, 33, width2), jnp.float32)   # 99 rows
    w1b = init_linear_weight(kk[1], width2, width2)
    w2b = init_linear_weight(kk[2], width2, width2)
    g1b = 1.0 + 0.1 * jax.random.normal(kk[3], (width2,), jnp.float32)
    b2b = 0.1 * jax.random.normal(kk[4], (width2,), jnp.float32)
    g2b = jnp.ones((width2,), jnp.float32)
    b1b = jnp.zeros((width2,), jnp.float32)

    out2 = temp_residual_layer_forward(
        data2, w1b, w2b, 0.5, g1b, b1b, 0.5, g2b, b2b)
    out2 = jax.block_until_ready(out2)
    ref2 = temp_residual_layer_reference(
        data2, w1b, w2b, 0.5, g1b, b1b, 0.5, g2b, b2b,
        matmul_dtype=jnp.bfloat16)

    assert out2.shape == data2.shape, out2.shape
    assert jnp.allclose(out2, ref2, atol=2e-3, rtol=2e-3), \
        "mismatch vs bf16-matmul reference (width=128)"

    print("KERNEL_OK")
</pallas_src>

<mosaic_0001>
module attributes {stable_mosaic.version = 11 : i64} {
  func.func @_temp_residual_kernel(%arg0: i32, %arg1: memref<32x128xf32, #tpu.memory_space<vmem>>, %arg2: memref<128x128xbf16, #tpu.memory_space<vmem>>, %arg3: memref<128x128xbf16, #tpu.memory_space<vmem>>, %arg4: memref<6x128xf32, #tpu.memory_space<vmem>>, %arg5: memref<32x128xf32, #tpu.memory_space<vmem>>) attributes {dimension_semantics = [#tpu.dimension_semantics<parallel>], iteration_bounds = array<i64: 4>, scalar_prefetch = 0 : i64, scratch_operands = 0 : i64, tpu.core_type = #tpu.core_type<tc>, window_params = [{transform_indices = @transform_0, window_bounds = array<i64: 32, 128>}, {pipeline_mode = #tpu.pipeline_mode<synchronous>, transform_indices = @transform_1, window_bounds = array<i64: 128, 128>}, {pipeline_mode = #tpu.pipeline_mode<synchronous>, transform_indices = @transform_2, window_bounds = array<i64: 128, 128>}, {pipeline_mode = #tpu.pipeline_mode<synchronous>, transform_indices = @transform_3, window_bounds = array<i64: 6, 128>}, {transform_indices = @transform_4, window_bounds = array<i64: 32, 128>}]} {
    %c0 = arith.constant 0 : index
    %c0_0 = arith.constant 0 : index
    %0 = vector.load %arg1[%c0, %c0_0] : memref<32x128xf32, #tpu.memory_space<vmem>>, vector<32x128xf32>
    %1 = arith.truncf %0 : vector<32x128xf32> to vector<32x128xbf16>
    %c0_1 = arith.constant 0 : index
    %c0_2 = arith.constant 0 : index
    %2 = vector.load %arg4[%c0_1, %c0_2] : memref<6x128xf32, #tpu.memory_space<vmem>>, vector<6x128xf32>
    %3 = vector.extract_strided_slice %2 {offsets = [0, 0], sizes = [1, 128], strides = [1, 1]} : vector<6x128xf32> to vector<1x128xf32>
    %4 = vector.extract_strided_slice %2 {offsets = [1, 0], sizes = [1, 128], strides = [1, 1]} : vector<6x128xf32> to vector<1x128xf32>
    %5 = vector.extract_strided_slice %2 {offsets = [2, 0], sizes = [1, 128], strides = [1, 1]} : vector<6x128xf32> to vector<1x128xf32>
    %6 = vector.extract_strided_slice %2 {offsets = [3, 0], sizes = [1, 128], strides = [1, 1]} : vector<6x128xf32> to vector<1x128xf32>
    %7 = vector.extract_strided_slice %2 {offsets = [4, 0], sizes = [1, 128], strides = [1, 1]} : vector<6x128xf32> to vector<1x128xf32>
    %8 = vector.extract_strided_slice %2 {offsets = [5, 0], sizes = [1, 128], strides = [1, 1]} : vector<6x128xf32> to vector<1x128xf32>
    %c0_3 = arith.constant 0 : index
    %c0_4 = arith.constant 0 : index
    %9 = vector.load %arg2[%c0_3, %c0_4] : memref<128x128xbf16, #tpu.memory_space<vmem>>, vector<128x128xbf16>
    %cst = arith.constant dense<0.000000e+00> : vector<32x128xf32>
    %10 = tpu.matmul %1, %9, %cst {dimension_numbers = #tpu.dot_dimension_numbers<[1], [0], [0], [1], [0, 0, 1, 1], [], []>} : vector<32x128xbf16>, vector<128x128xbf16>, vector<32x128xf32> -> vector<32x128xf32>
    %11 = vector.broadcast %3 : vector<1x128xf32> to vector<32x128xf32>
    %12 = arith.mulf %10, %11 : vector<32x128xf32>
    %13 = math.tanh %12 : vector<32x128xf32>
    %14 = vector.broadcast %4 : vector<1x128xf32> to vector<32x128xf32>
    %15 = arith.mulf %13, %14 : vector<32x128xf32>
    %16 = vector.broadcast %5 : vector<1x128xf32> to vector<32x128xf32>
    %17 = arith.addf %15, %16 : vector<32x128xf32>
    %cst_5 = arith.constant 0.000000e+00 : f32
    %18 = vector.broadcast %cst_5 : f32 to vector<32x128xf32>
    %19 = arith.maximumf %17, %18 : vector<32x128xf32>
    %20 = arith.truncf %19 : vector<32x128xf32> to vector<32x128xbf16>
    %c0_6 = arith.constant 0 : index
    %c0_7 = arith.constant 0 : index
    %21 = vector.load %arg3[%c0_6, %c0_7] : memref<128x128xbf16, #tpu.memory_space<vmem>>, vector<128x128xbf16>
    %cst_8 = arith.constant dense<0.000000e+00> : vector<32x128xf32>
    %22 = tpu.matmul %20, %21, %cst_8 {dimension_numbers = #tpu.dot_dimension_numbers<[1], [0], [0], [1], [0, 0, 1, 1], [], []>} : vector<32x128xbf16>, vector<128x128xbf16>, vector<32x128xf32> -> vector<32x128xf32>
    %23 = vector.broadcast %6 : vector<1x128xf32> to vector<32x128xf32>
    %24 = arith.mulf %22, %23 : vector<32x128xf32>
    %25 = math.tanh %24 : vector<32x128xf32>
    %26 = vector.broadcast %7 : vector<1x128xf32> to vector<32x128xf32>
    %27 = arith.mulf %25, %26 : vector<32x128xf32>
    %28 = vector.broadcast %8 : vector<1x128xf32> to vector<32x128xf32>
    %29 = arith.addf %27, %28 : vector<32x128xf32>
    %30 = arith.addf %29, %0 : vector<32x128xf32>
    %cst_9 = arith.constant 0.000000e+00 : f32
    %31 = vector.broadcast %cst_9 : f32 to vector<32x128xf32>
    %32 = arith.maximumf %30, %31 : vector<32x128xf32>
    %c0_10 = arith.constant 0 : index
    %c0_11 = arith.constant 0 : index
    %33 = vector.load %arg5[%c0_10, %c0_11] : memref<32x128xf32, #tpu.memory_space<vmem>>, vector<32x128xf32>
    tpu.vector_store %arg5[%c0_10, %c0_11], %32 {strides = array<i32>} : memref<32x128xf32, #tpu.memory_space<vmem>>, vector<32x128xf32>,
    return
  }
  func.func @transform_0(%arg0: i32) -> (i32, i32) {
    %c0_i32 = arith.constant 0 : i32
    %c0_i32_0 = arith.constant 0 : i32
    return %arg0, %c0_i32 : i32, i32
  }
  func.func @transform_1(%arg0: i32) -> (i32, i32) {
    %c0_i32 = arith.constant 0 : i32
    %c0_i32_0 = arith.constant 0 : i32
    %c0_i32_1 = arith.constant 0 : i32
    return %c0_i32, %c0_i32_0 : i32, i32
  }
  func.func @transform_2(%arg0: i32) -> (i32, i32) {
    %c0_i32 = arith.constant 0 : i32
    %c0_i32_0 = arith.constant 0 : i32
    %c0_i32_1 = arith.constant 0 : i32
    return %c0_i32, %c0_i32_0 : i32, i32
  }
  func.func @transform_3(%arg0: i32) -> (i32, i32) {
    %c0_i32 = arith.constant 0 : i32
    %c0_i32_0 = arith.constant 0 : i32
    %c0_i32_1 = arith.constant 0 : i32
    return %c0_i32, %c0_i32_0 : i32, i32
  }
  func.func @transform_4(%arg0: i32) -> (i32, i32) {
    %c0_i32 = arith.constant 0 : i32
    %c0_i32_0 = arith.constant 0 : i32
    return %arg0, %c0_i32 : i32, i32
  }
}

</mosaic_0001>

<llo_original>
// kernel: tpu_custom_call.1
$region0: #{tpu_custom_call.1}
  #allocation0 [shape = 'u32[]', space=smem, size = 0x4, offset = 0x4, fixed_abs, tag = 'smem constant byte address 0x4 - core index']
  #allocation1 [shape = 'u32[72,128]{1,0:T(1,128)}', space=vmem, size = 0x9000, scoped, tag = 'internal scratch']
  %s0 = inlined_call_operand.hbm [shape: f32[128,128], index: 0, kind: input, shape index: {}]
  %s1 = inlined_call_operand.hbm [shape: bf16[128,128], index: 1, kind: input, shape index: {}]
  %s2 = inlined_call_operand.hbm [shape: bf16[128,128], index: 2, kind: input, shape index: {}]
  %s3 = inlined_call_operand.hbm [shape: f32[6,128], index: 3, kind: input, shape index: {}]
  %s4 = inlined_call_operand.hbm [shape: f32[128,128], index: 4, kind: output, shape index: {}]
  %s5 = sld [smem:[#allocation0]]
  $region65: #{tpu_custom_call.1} parent=0
    _
  %s7 = ssub.s32 1, %s5
  %s8 = scalar_select 0, %s7, %s5
  $region1: #{tpu_custom_call.1} parent=0
    #allocation2 [shape = 'u8[32768]{0}', space=vmem, size = 0x8000, scoped, tag = 'input window, operand 0']
    #allocation3 [shape = 's32[2]{0}', space=sflag, size = 0x8, scoped, tag = 'scoped memory for tpu_custom_call.1']
    #allocation4 [shape = 's32[2]{0}', space=sflag, size = 0x8, scoped, tag = 'scoped memory for tpu_custom_call.1']
    #allocation5 [shape = 'u8[32768]{0}', space=vmem, size = 0x8000, scoped, tag = 'input window, operand 1, single buffered']
    #allocation6 [shape = 's32[1]{0}', space=sflag, size = 0x4, scoped, tag = 'scoped memory for tpu_custom_call.1']
    #allocation7 [shape = 'u8[32768]{0}', space=vmem, size = 0x8000, scoped, tag = 'input window, operand 2, single buffered']
    #allocation8 [shape = 'u8[4096]{0}', space=vmem, size = 0x1000, scoped, tag = 'input window, operand 3, single buffered']
    #allocation9 [shape = 's32[1]{0}', space=sflag, size = 0x4, scoped, tag = 'scoped memory for tpu_custom_call.1']
    #allocation10 [shape = 'u8[32768]{0}', space=vmem, size = 0x8000, scoped, tag = 'output window, operand 0']
    %9 = vsyncpa [#allocation3], 0
    %s10 = scalar_lea.sflag [#allocation3], 1
    %11 = vsyncpa %s10, 0
    %12 = vsyncpa [#allocation6], 0
    %13 = vsyncpa [#allocation9], 0
    %14 = vsyncpa [#allocation4], 0
    %s15 = scalar_lea.sflag [#allocation4], 1
    %16 = vsyncpa %s15, 0
    loop: start=0, step=1, limit=6
    $region2: #{tpu_custom_call.1} parent=1 // loop_pre_header
      _
    $region3: #{tpu_custom_call.1} parent=1 // loop_header
      %s18 = sphi 0, %s22
      %p19 = scmp.ge.s32.totalorder %s18, 6
      %s28 = sphi 0, %s30
      %s31 = sphi 0, %s28
      %s32 = sphi 0, %s31
      %s48 = sphi 0, %s32
      %s52 = sphi 0, %s52
      %s54 = sphi 0, %s52
      %s55 = sphi 0, %s54
      %s69 = sphi 0, %s55
      %s73 = sphi 0, %s73
      %s75 = sphi 0, %s73
      %s76 = sphi 0, %s75
      %s90 = sphi 0, %s76
      %s94 = sphi 0, %s94
      %s96 = sphi 0, %s94
      %s97 = sphi 0, %s96
      %s111 = sphi 0, %s97
      %s117 = sphi 0, %s119
      %s120 = sphi 0, %s117
      %s121 = sphi 0, %s120
      %s137 = sphi 0, %s121
    $region4: #{tpu_custom_call.1} parent=1 // loop_header_branch
      %21 = sbr.rel (%p19) target = $region8
    $region5: #{tpu_custom_call.1} parent=1 // loop_body
      %s23 = ssub.s32 %s18, 1
      %s24 = ssub.s32 %s18, 2
      %s25 = sadd.s32 %s18, 1
      %s26 = ssub.s32 %s18, %s25
      %p27 = scmp.eq.s32.totalorder %s26, 0
      %s29 = sadd.s32 %s28, 1
      %s30 = scalar_select %p27, %s28, %s29
      %p33 = pneg %p27
      %p34 = scmp.eq.s32.totalorder %s18, 3
      %p35 = por %p33, %p34
      %p36 = scmp.ne.s32.totalorder %s28, %s31
      %p37 = scmp.eq.s32.totalorder %s18, 0
      %p38 = por %p36, %p37
      %p39 = scmp.ne.s32.totalorder %s28, %s31
      %p40 = scmp.eq.s32.totalorder %s23, 3
      %p41 = por %p39, %p40
      %p42 = scmp.ne.s32.totalorder %s31, %s32
      %p43 = scmp.eq.s32.totalorder %s23, 0
      %p44 = por %p42, %p43
      %p45 = scmp.ne.s32.totalorder %s31, %s32
      %p46 = scmp.eq.s32.totalorder %s24, 3
      %p47 = por %p45, %p46
      %p49 = scmp.ne.s32.totalorder %s32, %s48
      %p50 = scmp.eq.s32.totalorder %s24, 0
      %p51 = por %p49, %p50
      %s53 = sadd.s32 %s52, 1
      %p56 = scmp.eq.s32.totalorder %s18, 3
      %p57 = scmp.ne.s32.totalorder %s52, %s54
      %p58 = scmp.eq.s32.totalorder %s18, 0
      %p59 = por %p57, %p58
      %p60 = scmp.ne.s32.totalorder %s52, %s54
      %p61 = scmp.eq.s32.totalorder %s23, 3
      %p62 = por %p60, %p61
      %p63 = scmp.ne.s32.totalorder %s54, %s55
      %p64 = scmp.eq.s32.totalorder %s23, 0
      %p65 = por %p63, %p64
      %p66 = scmp.ne.s32.totalorder %s54, %s55
      %p67 = scmp.eq.s32.totalorder %s24, 3
      %p68 = por %p66, %p67
      %p70 = scmp.ne.s32.totalorder %s55, %s69
      %p71 = scmp.eq.s32.totalorder %s24, 0
      %p72 = por %p70, %p71
      %s74 = sadd.s32 %s73, 1
      %p77 = scmp.eq.s32.totalorder %s18, 3
      %p78 = scmp.ne.s32.totalorder %s73, %s75
      %p79 = scmp.eq.s32.totalorder %s18, 0
      %p80 = por %p78, %p79
      %p81 = scmp.ne.s32.totalorder %s73, %s75
      %p82 = scmp.eq.s32.totalorder %s23, 3
      %p83 = por %p81, %p82
      %p84 = scmp.ne.s32.totalorder %s75, %s76
      %p85 = scmp.eq.s32.totalorder %s23, 0
      %p86 = por %p84, %p85
      %p87 = scmp.ne.s32.totalorder %s75, %s76
      %p88 = scmp.eq.s32.totalorder %s24, 3
      %p89 = por %p87, %p88
      %p91 = scmp.ne.s32.totalorder %s76, %s90
      %p92 = scmp.eq.s32.totalorder %s24, 0
      %p93 = por %p91, %p92
      %s95 = sadd.s32 %s94, 1
      %p98 = scmp.eq.s32.totalorder %s18, 3
      %p99 = scmp.ne.s32.totalorder %s94, %s96
      %p100 = scmp.eq.s32.totalorder %s18, 0
      %p101 = por %p99, %p100
      %p102 = scmp.ne.s32.totalorder %s94, %s96
      %p103 = scmp.eq.s32.totalorder %s23, 3
      %p104 = por %p102, %p103
      %p105 = scmp.ne.s32.totalorder %s96, %s97
      %p106 = scmp.eq.s32.totalorder %s23, 0
      %p107 = por %p105, %p106
      %p108 = scmp.ne.s32.totalorder %s96, %s97
      %p109 = scmp.eq.s32.totalorder %s24, 3
      %p110 = por %p108, %p109
      %p112 = scmp.ne.s32.totalorder %s97, %s111
      %p113 = scmp.eq.s32.totalorder %s24, 0
      %p114 = por %p112, %p113
      %s115 = ssub.s32 %s18, %s25
      %p116 = scmp.eq.s32.totalorder %s115, 0
      %s118 = sadd.s32 %s117, 1
      %s119 = scalar_select %p116, %s117, %s118
      %p122 = pneg %p116
      %p123 = scmp.eq.s32.totalorder %s18, 3
      %p124 = por %p122, %p123
      %p125 = scmp.ne.s32.totalorder %s117, %s120
      %p126 = scmp.eq.s32.totalorder %s18, 0
      %p127 = por %p125, %p126
      %p128 = scmp.ne.s32.totalorder %s117, %s120
      %p129 = scmp.eq.s32.totalorder %s23, 3
      %p130 = por %p128, %p129
      %p131 = scmp.ne.s32.totalorder %s120, %s121
      %p132 = scmp.eq.s32.totalorder %s23, 0
      %p133 = por %p131, %p132
      %p134 = scmp.ne.s32.totalorder %s120, %s121
      %p135 = scmp.eq.s32.totalorder %s24, 3
      %p136 = por %p134, %p135
      %p138 = scmp.ne.s32.totalorder %s121, %s137
      %p139 = scmp.eq.s32.totalorder %s24, 0
      %p140 = por %p138, %p139
      %p141 = scmp.le.s32.totalorder 1, %s18
      %p142 = scmp.lt.s32.totalorder %s18, 5
      %p143 = pnand %p141, %p142
      %p144 = pneg %p143
      // Predicated region
      $region9: #{tpu_custom_call.1} parent=5 // pred_check
        _
      $region10: #{tpu_custom_call.1} parent=5 // pred_check_branch
        %146 = sbr.rel (%p143) target = $region12
      $region11: #{tpu_custom_call.1} parent=5 // pred_region
        %s147 = ssub.s32 %s18, 1
        // Predicated region
        $region13: #{tpu_custom_call.1} parent=11 // pred_check
          %p148 = pneg %p65
        $region14: #{tpu_custom_call.1} parent=11 // pred_check_branch
          %150 = sbr.rel (%p148) target = $region16
        $region15: #{tpu_custom_call.1} parent=11 // pred_region
          %152 = vsyncadd [#allocation6], 0
          %s153 = sshll.u32 %s1, 4
          %s154 = int_to_ptr.hbm [resolvable:$true] %s153
          %s155 = sshll.u32 [#allocation5], 4
          %s156 = int_to_ptr.vmem [resolvable:$true] %s155
          %161 = dma.hbm_to_vmem [thread:$0]  %s154, 1024, %s156, [#allocation6], 64, 64, 4
        $region16: #{tpu_custom_call.1} parent=11 // pred_fallthru
          _
        // Predicated region
        $region17: #{tpu_custom_call.1} parent=11 // pred_check
          %p162 = pneg %p86
        $region18: #{tpu_custom_call.1} parent=11 // pred_check_branch
          %164 = sbr.rel (%p162) target = $region20
        $region19: #{tpu_custom_call.1} parent=11 // pred_region
          %166 = vsyncadd [#allocation6], 0
          %s167 = sshll.u32 %s2, 4
          %s168 = int_to_ptr.hbm [resolvable:$true] %s167
          %s169 = sshll.u32 [#allocation7], 4
          %s170 = int_to_ptr.vmem [resolvable:$true] %s169
          %175 = dma.hbm_to_vmem [thread:$0]  %s168, 1024, %s170, [#allocation6], 64, 64, 4
        $region20: #{tpu_custom_call.1} parent=11 // pred_fallthru
          _
        // Predicated region
        $region21: #{tpu_custom_call.1} parent=11 // pred_check
          %p176 = pneg %p107
        $region22: #{tpu_custom_call.1} parent=11 // pred_check_branch
          %178 = sbr.rel (%p176) target = $region24
        $region23: #{tpu_custom_call.1} parent=11 // pred_region
          %180 = vsyncadd [#allocation9], 0
          %s182 = sshll.u32 %s3, 4
          %s183 = int_to_ptr.hbm [resolvable:$true] %s182
          %s184 = sshll.u32 [#allocation8], 4
          %s185 = int_to_ptr.vmem [resolvable:$true] %s184
          %187 = dma.hbm_to_vmem [thread:$0]  %s183, 128, %s185, [#allocation9]
        $region24: #{tpu_custom_call.1} parent=11 // pred_fallthru
          _
      $region12: #{tpu_custom_call.1} parent=5 // pred_fallthru
        _
      %p188 = scmp.lt.s32.totalorder %s18, 4
      // Predicated region
      $region25: #{tpu_custom_call.1} parent=5 // pred_check
        %p189 = pneg %p188
      $region26: #{tpu_custom_call.1} parent=5 // pred_check_branch
        %191 = sbr.rel (%p189) target = $region28
      $region27: #{tpu_custom_call.1} parent=5 // pred_region
        // Predicated region
        $region29: #{tpu_custom_call.1} parent=27 // pred_check
          %p192 = pneg %p38
        $region30: #{tpu_custom_call.1} parent=27 // pred_check_branch
          %194 = sbr.rel (%p192) target = $region32
        $region31: #{tpu_custom_call.1} parent=27 // pred_region
          %s195 = sand.u32 %s28, 1
          %s196 = scalar_lea.sflag [#allocation3], %s195
          %s197 = sand.u32 %s28, 1
          %s198 = smul.addr %s197, 32
          %s199 = scalar_lea.vmem [#allocation2], %s198
          %s200 = smul.u32 4, %s18
          %202 = vsyncadd %s196, 0
          %s203 = smul.addr %s200, 8
          %s204 = scalar_lea.hbm %s0, %s203
          %s205 = sshll.u32 %s204, 4
          %s206 = int_to_ptr.hbm [resolvable:$true] %s205
          %s207 = sshll.u32 %s199, 4
          %s208 = int_to_ptr.vmem [resolvable:$true] %s207
          %213 = dma.hbm_to_vmem [thread:$0]  %s206, 512, %s208, %s196, 128, 128, 8
        $region32: #{tpu_custom_call.1} parent=27 // pred_fallthru
          _
      $region28: #{tpu_custom_call.1} parent=5 // pred_fallthru
        _
      %p214 = scmp.le.s32.totalorder 1, %s18
      %p215 = scmp.lt.s32.totalorder %s18, 5
      %p216 = pnand %p214, %p215
      %p217 = pneg %p216
      // Predicated region
      $region33: #{tpu_custom_call.1} parent=5 // pred_check
        _
      $region34: #{tpu_custom_call.1} parent=5 // pred_check_branch
        %219 = sbr.rel (%p216) target = $region36
      $region35: #{tpu_custom_call.1} parent=5 // pred_region
        %s220 = ssub.s32 %s18, 1
        %s221 = sand.u32 %s31, 1
        %s222 = scalar_lea.sflag [#allocation3], %s221
        %s223 = sand.u32 %s31, 1
        %s224 = smul.addr %s223, 32
        %s225 = scalar_lea.vmem [#allocation2], %s224
        // Predicated region
        $region37: #{tpu_custom_call.1} parent=35 // pred_check
          %p226 = pneg %p44
        $region38: #{tpu_custom_call.1} parent=35 // pred_check_branch
          %228 = sbr.rel (%p226) target = $region40
        $region39: #{tpu_custom_call.1} parent=35 // pred_region
          %230 = dma.done %s222, 512
        $region40: #{tpu_custom_call.1} parent=35 // pred_fallthru
          _
        // Predicated region
        $region41: #{tpu_custom_call.1} parent=35 // pred_check
          %p231 = pneg %p65
        $region42: #{tpu_custom_call.1} parent=35 // pred_check_branch
          %233 = sbr.rel (%p231) target = $region44
        $region43: #{tpu_custom_call.1} parent=35 // pred_region
          %235 = dma.done [#allocation6], 1024
        $region44: #{tpu_custom_call.1} parent=35 // pred_fallthru
          _
        // Predicated region
        $region45: #{tpu_custom_call.1} parent=35 // pred_check
          %p236 = pneg %p86
        $region46: #{tpu_custom_call.1} parent=35 // pred_check_branch
          %238 = sbr.rel (%p236) target = $region48
        $region47: #{tpu_custom_call.1} parent=35 // pred_region
          %240 = dma.done [#allocation6], 1024
        $region48: #{tpu_custom_call.1} parent=35 // pred_fallthru
          _
        // Predicated region
        $region49: #{tpu_custom_call.1} parent=35 // pred_check
          %p241 = pneg %p107
        $region50: #{tpu_custom_call.1} parent=35 // pred_check_branch
          %243 = sbr.rel (%p241) target = $region52
        $region51: #{tpu_custom_call.1} parent=35 // pred_region
          %245 = dma.done [#allocation9], 128
        $region52: #{tpu_custom_call.1} parent=35 // pred_fallthru
          _
        %s246 = sand.u32 %s31, 1
        %s247 = scalar_lea.sflag [#allocation3], %s246
        %s248 = sand.u32 %s31, 1
        %s249 = smul.addr %s248, 32
        %s250 = scalar_lea.vmem [#allocation2], %s249
        %p251 = pneg %p44
        %p252 = pneg %p41
        %p253 = pneg %p65
        %p254 = pneg %p62
        %p255 = pneg %p86
        %p256 = pneg %p83
        %p257 = pneg %p107
        %p258 = pneg %p104
        %p259 = pneg %p133
        %p260 = pneg %p130
        %s261 = sand.u32 %s120, 1
        %s262 = scalar_lea.sflag [#allocation4], %s261
        %s263 = sand.u32 %s120, 1
        %s264 = smul.addr %s263, 32
        %s265 = scalar_lea.vmem [#allocation10], %s264
        %s266 = smul.u32 4, %s23
        %s267 = smul.u32 4, %s23
        %v268 = vld [vmem:[%s225] sm:$0xff]
        %v269 = vld [vmem:[%s225 + $0x8] sm:$0xff]
        %v270 = vld [vmem:[%s225 + $0x10] sm:$0xff]
        %v271 = vld [vmem:[%s225 + $0x18] sm:$0xff]
        %v272 = vpack.c.bf16 %v269, %v268
        %v273 = vpack.c.bf16 %v271, %v270
        %v274 = vld [vmem:[#allocation8] sm:$0x3f]
        %v275 = vld [vmem:[#allocation5] sm:$0xf]
        %v276 = vld [vmem:[#allocation5 + $0x4] sm:$0xf]
        %v277 = vld [vmem:[#allocation5 + $0x8] sm:$0xf]
        %v278 = vld [vmem:[#allocation5 + $0xc] sm:$0xf]
        %v279 = vld [vmem:[#allocation5 + $0x10] sm:$0xf]
        %v280 = vld [vmem:[#allocation5 + $0x14] sm:$0xf]
        %v281 = vld [vmem:[#allocation5 + $0x18] sm:$0xf]
        %v282 = vld [vmem:[#allocation5 + $0x1c] sm:$0xf]
        %v283 = vld [vmem:[#allocation5 + $0x20] sm:$0xf]
        %v284 = vld [vmem:[#allocation5 + $0x24] sm:$0xf]
        %v285 = vld [vmem:[#allocation5 + $0x28] sm:$0xf]
        %v286 = vld [vmem:[#allocation5 + $0x2c] sm:$0xf]
        %v287 = vld [vmem:[#allocation5 + $0x30] sm:$0xf]
        %v288 = vld [vmem:[#allocation5 + $0x34] sm:$0xf]
        %v289 = vld [vmem:[#allocation5 + $0x38] sm:$0xf]
        %v290 = vld [vmem:[#allocation5 + $0x3c] sm:$0xf]
        %v307 = vunpack.c.l.b16 %v275
        %v308 = vunpack.c.l.b16 %v276
        %v309 = vunpack.c.l.b16 %v277
        %v310 = vunpack.c.l.b16 %v278
        %v311 = vunpack.c.l.b16 %v279
        %v312 = vunpack.c.l.b16 %v280
        %v313 = vunpack.c.l.b16 %v281
        %v314 = vunpack.c.l.b16 %v282
        %v315 = vunpack.c.l.b16 %v283
        %v316 = vunpack.c.l.b16 %v284
        %v317 = vunpack.c.l.b16 %v285
        %v318 = vunpack.c.l.b16 %v286
        %v319 = vunpack.c.l.b16 %v287
        %v320 = vunpack.c.l.b16 %v288
        %v321 = vunpack.c.l.b16 %v289
        %v322 = vunpack.c.l.b16 %v290
        %v323 = vpack.c.b16 %v308, %v307
        %v324 = vpack.c.b16 %v310, %v309
        %v325 = vpack.c.b16 %v312, %v311
        %v326 = vpack.c.b16 %v314, %v313
        %v327 = vpack.c.b16 %v316, %v315
        %v328 = vpack.c.b16 %v318, %v317
        %v329 = vpack.c.b16 %v320, %v319
        %v330 = vpack.c.b16 %v322, %v321
        %339 = vmatpush.bf16.msra.mxu0 %v330
        %340 = vmatpush.bf16.msra.mxu0 %v329
        %341 = vmatpush.bf16.msra.mxu0 %v328
        %342 = vmatpush.bf16.msra.mxu0 %v327
        %343 = vmatpush.bf16.msra.mxu0 %v326
        %344 = vmatpush.bf16.msra.mxu0 %v325
        %345 = vmatpush.bf16.msra.mxu0 %v324
        %346 = vmatpush.bf16.msra.mxu0 %v323
        %347 = vmatmul.bf16.gmra.mxu0 %v272
        %v348 = vpop.f32.mrf.mxu0
        %v349 = vadd.f32 0.0, %v348
        %v350 = vpop.f32.mrf.mxu0
        %v351 = vadd.f32 0.0, %v350
        %352 = vmatmul.bf16.gmra.mxu0 %v273
        %v353 = vpop.f32.mrf.mxu0
        %v354 = vadd.f32 0.0, %v353
        %v355 = vpop.f32.mrf.mxu0
        %v356 = vadd.f32 0.0, %v355
        %357 = vdwg.mxu0
        %v358 = vperm.slane %v274, 0
        %v359 = vmul.f32 %v349, %v358
        %v360 = vmul.f32 %v351, %v358
        %v361 = vmul.f32 %v354, %v358
        %v362 = vmul.f32 %v356, %v358
        %v363 = vtanh.pop %v359
        %v364 = vtanh.pop %v360
        %v365 = vtanh.pop %v361
        %v366 = vtanh.pop %v362
        %v367 = vperm.slane %v274, 1
        %v368 = vmul.f32 %v363, %v367
        %v369 = vmul.f32 %v364, %v367
        %v370 = vmul.f32 %v365, %v367
        %v371 = vmul.f32 %v366, %v367
        %v372 = vperm.slane %v274, 2
        %v373 = vadd.f32 %v368, %v372
        %v374 = vadd.f32 %v369, %v372
        %v375 = vadd.f32 %v370, %v372
        %v376 = vadd.f32 %v371, %v372
        %v377 = vmax.f32 %v373, 0.0
        %v378 = vmax.f32 %v374, 0.0
        %v379 = vmax.f32 %v375, 0.0
        %v380 = vmax.f32 %v376, 0.0
        %v381 = vpack.c.bf16 %v378, %v377
        %v382 = vpack.c.bf16 %v380, %v379
        %v383 = vld [vmem:[#allocation7] sm:$0xf]
        %v384 = vld [vmem:[#allocation7 + $0x4] sm:$0xf]
        %v385 = vld [vmem:[#allocation7 + $0x8] sm:$0xf]
        %v386 = vld [vmem:[#allocation7 + $0xc] sm:$0xf]
        %v387 = vld [vmem:[#allocation7 + $0x10] sm:$0xf]
        %v388 = vld [vmem:[#allocation7 + $0x14] sm:$0xf]
        %v389 = vld [vmem:[#allocation7 + $0x18] sm:$0xf]
        %v390 = vld [vmem:[#allocation7 + $0x1c] sm:$0xf]
        %v391 = vld [vmem:[#allocation7 + $0x20] sm:$0xf]
        %v392 = vld [vmem:[#allocation7 + $0x24] sm:$0xf]
        %v393 = vld [vmem:[#allocation7 + $0x28] sm:$0xf]
        %v394 = vld [vmem:[#allocation7 + $0x2c] sm:$0xf]
        %v395 = vld [vmem:[#allocation7 + $0x30] sm:$0xf]
        %v396 = vld [vmem:[#allocation7 + $0x34] sm:$0xf]
        %v397 = vld [vmem:[#allocation7 + $0x38] sm:$0xf]
        %v398 = vld [vmem:[#allocation7 + $0x3c] sm:$0xf]
        %v415 = vunpack.c.l.b16 %v383
        %v416 = vunpack.c.l.b16 %v384
        %v417 = vunpack.c.l.b16 %v385
        %v418 = vunpack.c.l.b16 %v386
        %v419 = vunpack.c.l.b16 %v387
        %v420 = vunpack.c.l.b16 %v388
        %v421 = vunpack.c.l.b16 %v389
        %v422 = vunpack.c.l.b16 %v390
        %v423 = vunpack.c.l.b16 %v391
        %v424 = vunpack.c.l.b16 %v392
        %v425 = vunpack.c.l.b16 %v393
        %v426 = vunpack.c.l.b16 %v394
        %v427 = vunpack.c.l.b16 %v395
        %v428 = vunpack.c.l.b16 %v396
        %v429 = vunpack.c.l.b16 %v397
        %v430 = vunpack.c.l.b16 %v398
        %v431 = vpack.c.b16 %v416, %v415
        %v432 = vpack.c.b16 %v418, %v417
        %v433 = vpack.c.b16 %v420, %v419
        %v434 = vpack.c.b16 %v422, %v421
        %v435 = vpack.c.b16 %v424, %v423
        %v436 = vpack.c.b16 %v426, %v425
        %v437 = vpack.c.b16 %v428, %v427
        %v438 = vpack.c.b16 %v430, %v429
        %447 = vmatpush.bf16.msra.mxu0 %v438
        %448 = vmatpush.bf16.msra.mxu0 %v437
        %449 = vmatpush.bf16.msra.mxu0 %v436
        %450 = vmatpush.bf16.msra.mxu0 %v435
        %451 = vmatpush.bf16.msra.mxu0 %v434
        %452 = vmatpush.bf16.msra.mxu0 %v433
        %453 = vmatpush.bf16.msra.mxu0 %v432
        %454 = vmatpush.bf16.msra.mxu0 %v431
        %455 = vmatmul.bf16.gmra.mxu0 %v381
        %v456 = vpop.f32.mrf.mxu0
        %v457 = vadd.f32 0.0, %v456
        %v458 = vpop.f32.mrf.mxu0
        %v459 = vadd.f32 0.0, %v458
        %460 = vmatmul.bf16.gmra.mxu0 %v382
        %v461 = vpop.f32.mrf.mxu0
        %v462 = vadd.f32 0.0, %v461
        %v463 = vpop.f32.mrf.mxu0
        %v464 = vadd.f32 0.0, %v463
        %465 = vdwg.mxu0
        %v466 = vperm.slane %v274, 3
        %v467 = vmul.f32 %v457, %v466
        %v468 = vmul.f32 %v459, %v466
        %v469 = vmul.f32 %v462, %v466
        %v470 = vmul.f32 %v464, %v466
        %v471 = vtanh.pop %v467
        %v472 = vtanh.pop %v468
        %v473 = vtanh.pop %v469
        %v474 = vtanh.pop %v470
        %v475 = vperm.slane %v274, 4
        %v476 = vmul.f32 %v471, %v475
        %v477 = vmul.f32 %v472, %v475
        %v478 = vmul.f32 %v473, %v475
        %v479 = vmul.f32 %v474, %v475
        %v480 = vperm.slane %v274, 5
        %v481 = vadd.f32 %v476, %v480
        %v482 = vadd.f32 %v477, %v480
        %v483 = vadd.f32 %v478, %v480
        %v484 = vadd.f32 %v479, %v480
        %v485 = vadd.f32 %v481, %v268
        %v486 = vadd.f32 %v482, %v269
        %v487 = vadd.f32 %v483, %v270
        %v488 = vadd.f32 %v484, %v271
        %v489 = vmax.f32 %v485, 0.0
        %v490 = vmax.f32 %v486, 0.0
        %v491 = vmax.f32 %v487, 0.0
        %v492 = vmax.f32 %v488, 0.0
        %493 = vst [vmem:[%s265] sm:$0xff] %v489
        %494 = vst [vmem:[%s265 + $0x8] sm:$0xff] %v490
        %495 = vst [vmem:[%s265 + $0x10] sm:$0xff] %v491
        %496 = vst [vmem:[%s265 + $0x18] sm:$0xff] %v492
        %s497 = sand.u32 %s120, 1
        %s498 = scalar_lea.sflag [#allocation4], %s497
        %s499 = sand.u32 %s120, 1
        %s500 = smul.addr %s499, 32
        %s501 = scalar_lea.vmem [#allocation10], %s500
        // Predicated region
        $region53: #{tpu_custom_call.1} parent=35 // pred_check
          %p502 = pneg %p130
        $region54: #{tpu_custom_call.1} parent=35 // pred_check_branch
          %504 = sbr.rel (%p502) target = $region56
        $region55: #{tpu_custom_call.1} parent=35 // pred_region
          %s505 = smul.u32 4, %s23
          %507 = vsyncadd %s498, 0
          %s508 = smul.addr %s505, 8
          %s509 = scalar_lea.hbm %s4, %s508
          %s510 = sshll.u32 %s501, 4
          %s511 = int_to_ptr.vmem [resolvable:$true] %s510
          %s512 = sshll.u32 %s509, 4
          %s513 = int_to_ptr.hbm [resolvable:$true] %s512
          %518 = dma.vmem_to_hbm [thread:$0]  %s511, 512, %s513, %s498, 128, 128, 8
        $region56: #{tpu_custom_call.1} parent=35 // pred_fallthru
          _
      $region36: #{tpu_custom_call.1} parent=5 // pred_fallthru
        _
      %p519 = scmp.le.s32.totalorder 2, %s18
      // Predicated region
      $region57: #{tpu_custom_call.1} parent=5 // pred_check
        %p520 = pneg %p519
      $region58: #{tpu_custom_call.1} parent=5 // pred_check_branch
        %522 = sbr.rel (%p520) target = $region60
      $region59: #{tpu_custom_call.1} parent=5 // pred_region
        %s523 = ssub.s32 %s18, 2
        // Predicated region
        $region61: #{tpu_custom_call.1} parent=59 // pred_check
          %p524 = pneg %p136
        $region62: #{tpu_custom_call.1} parent=59 // pred_check_branch
          %526 = sbr.rel (%p524) target = $region64
        $region63: #{tpu_custom_call.1} parent=59 // pred_region
          %s527 = sand.u32 %s121, 1
          %s528 = scalar_lea.sflag [#allocation4], %s527
          %s529 = sand.u32 %s121, 1
          %s530 = smul.addr %s529, 32
          %s531 = scalar_lea.vmem [#allocation10], %s530
          %533 = dma.done %s528, 512
        $region64: #{tpu_custom_call.1} parent=59 // pred_fallthru
          _
      $region60: #{tpu_custom_call.1} parent=5 // pred_fallthru
        _
    $region6: #{tpu_custom_call.1} parent=1 // loop_footer
      %s22 = sadd.s32 1, %s18
    $region7: #{tpu_custom_call.1} parent=1 // loop_footer_branch
      %17 = sbr.rel target = $region3
    $region8: #{tpu_custom_call.1} parent=1 // loop_exit
      _
    %534 = vsyncpa [#allocation3], 1
    %s535 = scalar_lea.sflag [#allocation3], 1
    %536 = vsyncpa %s535, 1
    %537 = vsyncpa [#allocation6], 1
    %538 = vsyncpa [#allocation9], 1
    %539 = vsyncpa [#allocation4], 1
    %s540 = scalar_lea.sflag [#allocation4], 1
    %541 = vsyncpa %s540, 1

</llo_original>
